<compile_context>
chip_gen: v5e
topology: v5e:2x2
jax: 0.10.0
libtpu: 0.0.40
codegen_flags: <defaults>
</compile_context>

<pallas_src>
import functools

import jax
import jax.numpy as jnp
from jax.experimental import pallas as pl
from jax.experimental.pallas import tpu as pltpu


def _round_up(x, m):
    return (x + m - 1) // m * m


# ---------------------------------------------------------------------------
# Pass 1 (norm=True): streamed conv tiles + streaming instance-norm statistics.
# ---------------------------------------------------------------------------
def _conv_stats_kernel(p_ref, w_ref, y_ref, mean_ref, rstd_ref,
                       sum_ref, ssq_ref, *, true_s, eps):
    # p_ref    : (1, Kp, tS)      bf16 im2col patch tile (streamed)
    # w_ref    : (Cout_p, Kw)     bf16 weight, Kw >= Kp, cols >= K are zeros
    # y_ref    : (1, Cout_p, tS)  f32 conv output tile (streamed to HBM)
    # mean_ref : (1, Cout_p, 1)   f32, resident over si, written at last si
    # rstd_ref : (1, Cout_p, 1)   f32, resident over si, written at last si
    # sum_ref / ssq_ref : (Cout_p, 1) f32 scratch accumulators
    si = pl.program_id(1)
    kp = p_ref.shape[1]

    @pl.when(si == 0)
    def _init():
        sum_ref[...] = jnp.zeros_like(sum_ref)
        ssq_ref[...] = jnp.zeros_like(ssq_ref)

    # MXU: (Cout_p, Kp) @ (Kp, tS) -> (Cout_p, tS) with f32 accumulation.
    # tS is a multiple of 128 -> lane-dense, unmasked stores.
    y = jnp.dot(w_ref[:, :kp], p_ref[0], preferred_element_type=jnp.float32)
    y_ref[0] = y.astype(y_ref.dtype)

    # Streaming E[y], E[y^2].  Padded S columns are exact zeros (the padded
    # patches are zero) so they contribute nothing to either sum.
    # NOTE: E[y^2]-E[y]^2 in f32 can cancel for huge S / large means; fine at
    # these sizes.  TODO(synk): shifted / two-pass variance at scale.
    sum_ref[...] += jnp.sum(y, axis=1, keepdims=True)
    ssq_ref[...] += jnp.sum(y * y, axis=1, keepdims=True)

    @pl.when(si == pl.num_programs(1) - 1)
    def _finalize_stats():
        inv_s = 1.0 / true_s
        mean = sum_ref[...] * inv_s
        var = jnp.maximum(ssq_ref[...] * inv_s - mean * mean, 0.0)
        mean_ref[0] = mean
        rstd_ref[0] = jax.lax.rsqrt(var + eps)


# ---------------------------------------------------------------------------
# Pass 2 (norm=True): streaming normalize + LeakyReLU.  Fully parallel.
# ---------------------------------------------------------------------------
def _norm_act_kernel(y_ref, mean_ref, rstd_ref, o_ref, *, negative_slope, use_relu):
    y = (y_ref[0] - mean_ref[0]) * rstd_ref[0]
    if use_relu:
        y = jnp.where(y >= 0, y, negative_slope * y)
    o_ref[0] = y.astype(o_ref.dtype)


# ---------------------------------------------------------------------------
# Single pass (norm=False): conv with LeakyReLU fused at the store.
# ---------------------------------------------------------------------------
def _conv_act_kernel(p_ref, w_ref, o_ref, *, negative_slope, use_relu):
    kp = p_ref.shape[1]
    y = jnp.dot(w_ref[:, :kp], p_ref[0], preferred_element_type=jnp.float32)
    if use_relu:
        y = jnp.where(y >= 0, y, negative_slope * y)
    o_ref[0] = y.astype(o_ref.dtype)


@functools.partial(jax.jit, static_argnames=(
    "stride", "padding", "dilation", "groups", "relu", "norm", "s_tile"))
def basic_conv(x, weight, *, stride=1, padding=0, dilation=1, groups=1,
               relu=True, norm=True, s_tile=2048):
    """x: (N, Cin, D, H, W) f32 NCDHW (like PyTorch); weight: (Cout, Cin, KD, KH, KW)."""
    assert groups == 1  # TODO(synk): grouped Conv3d (groups > 1) not implemented.
    N, Cin, D, H, W = x.shape
    Cout, Cin_w, KD, KH, KW = weight.shape
    assert Cin_w == Cin
    s, p, dil = stride, padding, dilation

    Dp, Hp, Wp = D + 2 * p, H + 2 * p, W + 2 * p
    Do = (Dp - dil * (KD - 1) - 1) // s + 1
    Ho = (Hp - dil * (KH - 1) - 1) // s + 1
    Wo = (Wp - dil * (KW - 1) - 1) // s + 1
    S = Do * Ho * Wo
    K = KD * KH * KW * Cin

    # Alignment: patch K -> bf16 sublane pack (16), weight K -> lane 128 (tiny,
    # zero-filled so MXU lane padding is guaranteed zero), Cout -> sublane 8,
    # S -> multiple of the 128-aligned S tile.
    Kp = _round_up(K, 16)
    Kw = _round_up(K, 128)
    Cout_p = _round_up(Cout, 8)
    tS = _round_up(min(s_tile, S), 128)
    S_pad = _round_up(S, tS)
    n_s_tiles = S_pad // tS

    # Feature-major im2col (feature order kd, kh, kw, cin), built in bf16 in a
    # single pass: cast the (small) padded input once, slice, and fold the
    # K zero-padding into the concatenate.
    xp = jnp.pad(x, ((0, 0), (0, 0), (p, p), (p, p), (p, p))).astype(jnp.bfloat16)
    pieces = []
    for kd in range(KD):
        for kh in range(KH):
            for kw in range(KW):
                sl = xp[:, :,
                        kd * dil: kd * dil + (Do - 1) * s + 1: s,
                        kh * dil: kh * dil + (Ho - 1) * s + 1: s,
                        kw * dil: kw * dil + (Wo - 1) * s + 1: s]  # (N,Cin,Do,Ho,Wo)
                pieces.append(sl.reshape(N, Cin, S))
    if Kp > K:
        pieces.append(jnp.zeros((N, Kp - K, S), jnp.bfloat16))
    patches = jnp.concatenate(pieces, axis=1)                      # (N, Kp, S)
    if S_pad > S:
        patches = jnp.pad(patches, ((0, 0), (0, 0), (0, S_pad - S)))

    # (Cout, Cin, KD, KH, KW) -> (Cout, (kd, kh, kw, cin)) matching patch order.
    w2 = jnp.transpose(weight, (0, 2, 3, 4, 1)).reshape(Cout, K)
    w2 = jnp.pad(w2, ((0, Cout_p - Cout), (0, Kw - K))).astype(jnp.bfloat16)

    # Explicit scoped-VMEM budget from the actual footprint (double-buffered
    # patch + conv-out tiles, resident weight/stats), capped at 64 MiB so the
    # same setting is valid on v7x (64 MiB physical VMEM per TC).
    fp = (2 * Kp * tS * 2 + 2 * Cout_p * Kw * 2 + 2 * Cout_p * tS * 4
          + 6 * Cout_p * 4)
    vmem_limit = int(min(max(4 * fp, 32 << 20), 64 << 20))

    patch_spec = pl.BlockSpec((1, Kp, tS), lambda n, si: (n, 0, si))
    # Weight is tiny (Cout_p*Kw bf16) and constant across the grid; a
    # pipeline_mode=pl.Buffered(1) would save one redundant ~KB buffer only.
    w_spec = pl.BlockSpec((Cout_p, Kw), lambda n, si: (0, 0))
    y_spec = pl.BlockSpec((1, Cout_p, tS), lambda n, si: (n, 0, si))
    stat_spec = pl.BlockSpec((1, Cout_p, 1), lambda n, si: (n, 0, 0))

    if norm:
        # Pass 1: conv -> HBM, streaming per-(n, channel) statistics.
        y, mean, rstd = pl.pallas_call(
            functools.partial(_conv_stats_kernel, true_s=S, eps=1e-5),
            out_shape=(jax.ShapeDtypeStruct((N, Cout_p, S_pad), jnp.float32),
                       jax.ShapeDtypeStruct((N, Cout_p, 1), jnp.float32),
                       jax.ShapeDtypeStruct((N, Cout_p, 1), jnp.float32)),
            grid_spec=pltpu.PrefetchScalarGridSpec(
                num_scalar_prefetch=0,
                grid=(N, n_s_tiles),
                in_specs=[patch_spec, w_spec],
                out_specs=[y_spec, stat_spec, stat_spec],
                scratch_shapes=[pltpu.VMEM((Cout_p, 1), jnp.float32),   # sum
                                pltpu.VMEM((Cout_p, 1), jnp.float32)],  # sum sq
            ),
            compiler_params=pltpu.CompilerParams(
                dimension_semantics=("parallel", "arbitrary"),
                vmem_limit_bytes=vmem_limit),
        )(patches, w2)

        # Pass 2: streaming normalize + LeakyReLU (no cross-tile dependence).
        out = pl.pallas_call(
            functools.partial(_norm_act_kernel, negative_slope=0.01,
                              use_relu=relu),
            out_shape=jax.ShapeDtypeStruct((N, Cout_p, S_pad), x.dtype),
            grid_spec=pltpu.PrefetchScalarGridSpec(
                num_scalar_prefetch=0,
                grid=(N, n_s_tiles),
                in_specs=[y_spec, stat_spec, stat_spec],
                out_specs=y_spec,
            ),
            compiler_params=pltpu.CompilerParams(
                dimension_semantics=("parallel", "parallel"),
                vmem_limit_bytes=vmem_limit),
        )(y, mean, rstd)
    else:
        # Single streaming pass: conv (+ optional LeakyReLU) straight to HBM.
        out = pl.pallas_call(
            functools.partial(_conv_act_kernel, negative_slope=0.01,
                              use_relu=relu),
            out_shape=jax.ShapeDtypeStruct((N, Cout_p, S_pad), x.dtype),
            grid_spec=pltpu.PrefetchScalarGridSpec(
                num_scalar_prefetch=0,
                grid=(N, n_s_tiles),
                in_specs=[patch_spec, w_spec],
                out_specs=y_spec,
            ),
            compiler_params=pltpu.CompilerParams(
                dimension_semantics=("parallel", "parallel"),
                vmem_limit_bytes=vmem_limit),
        )(patches, w2)

    return out[:, :Cout, :S].reshape(N, Cout, Do, Ho, Wo)   # already NCDHW


def _reference(x, weight, *, stride, padding, dilation, relu, norm):
    dn = jax.lax.conv_dimension_numbers(x.shape, weight.shape,
                                        ("NCDHW", "OIDHW", "NCDHW"))
    y = jax.lax.conv_general_dilated(
        x, weight, (stride,) * 3, [(padding, padding)] * 3,
        rhs_dilation=(dilation,) * 3, dimension_numbers=dn)
    if norm:
        mean = y.mean(axis=(2, 3, 4), keepdims=True)
        var = ((y - mean) ** 2).mean(axis=(2, 3, 4), keepdims=True)
        y = (y - mean) * jax.lax.rsqrt(var + 1e-5)
    if relu:
        y = jnp.where(y >= 0, y, 0.01 * y)
    return y


if __name__ == "__main__":
    # BasicConv(in_planes=4, out_planes=8, kernel_size=3, stride=1, padding=1,
    #           dilation=1, groups=1, relu=True, norm=True, bias=False)
    N, Cin, D, H, W = 2, 4, 8, 8, 8
    Cout, KS = 8, 3
    stride, padding, dilation = 1, 1, 1

    key = jax.random.PRNGKey(0)
    kx, kw = jax.random.split(key)
    x = jax.random.normal(kx, (N, Cin, D, H, W), dtype=jnp.float32)
    fan_in = Cin * KS * KS * KS
    weight = jax.random.normal(kw, (Cout, Cin, KS, KS, KS),
                               dtype=jnp.float32) / jnp.sqrt(fan_in)

    # bf16 MXU operands -> loosened (but still tight) comparison tolerance.
    tol = dict(atol=2e-2, rtol=2e-2)

    ref = _reference(x, weight, stride=stride, padding=padding,
                     dilation=dilation, relu=True, norm=True)

    # Multi-S-tile path (streamed statistics + two-pass normalize).
    out = jax.block_until_ready(
        basic_conv(x, weight, stride=stride, padding=padding,
                   dilation=dilation, relu=True, norm=True, s_tile=128))
    assert out.shape == ref.shape == (N, Cout, D, H, W)
    assert jnp.allclose(out, ref, **tol), "mismatch vs reference (tiled S, norm)"

    # Single-S-tile path (default s_tile clamps to S).
    out1 = jax.block_until_ready(
        basic_conv(x, weight, stride=stride, padding=padding,
                   dilation=dilation, relu=True, norm=True))
    assert jnp.allclose(out1, ref, **tol), "mismatch vs reference (single tile, norm)"

    # norm=False path: LeakyReLU fused at the conv store, single streaming pass.
    out2 = jax.block_until_ready(
        basic_conv(x, weight, stride=stride, padding=padding,
                   dilation=dilation, relu=True, norm=False, s_tile=128))
    ref2 = _reference(x, weight, stride=stride, padding=padding,
                      dilation=dilation, relu=True, norm=False)
    assert jnp.allclose(out2, ref2, **tol), "mismatch vs reference (conv+relu)"

    # Conv-only path.
    out3 = jax.block_until_ready(
        basic_conv(x, weight, stride=stride, padding=padding,
                   dilation=dilation, relu=False, norm=False, s_tile=128))
    ref3 = _reference(x, weight, stride=stride, padding=padding,
                      dilation=dilation, relu=False, norm=False)
    assert jnp.allclose(out3, ref3, **tol), "mismatch vs reference (conv only)"

    print("KERNEL_OK")
</pallas_src>

<mosaic_0001>
module attributes {stable_mosaic.version = 11 : i64} {
  func.func @_norm_act_kernel(%arg0: i32, %arg1: i32, %arg2: memref<1x8x128xf32, #tpu.memory_space<vmem>>, %arg3: memref<1x8x1xf32, #tpu.memory_space<vmem>>, %arg4: memref<1x8x1xf32, #tpu.memory_space<vmem>>, %arg5: memref<1x8x128xf32, #tpu.memory_space<vmem>>) attributes {dimension_semantics = [#tpu.dimension_semantics<parallel>, #tpu.dimension_semantics<parallel>], iteration_bounds = array<i64: 2, 4>, scalar_prefetch = 0 : i64, scratch_operands = 0 : i64, tpu.core_type = #tpu.core_type<tc>, window_params = [{transform_indices = @transform_0, window_bounds = array<i64: 1, 8, 128>}, {transform_indices = @transform_1, window_bounds = array<i64: 1, 8, 1>}, {transform_indices = @transform_2, window_bounds = array<i64: 1, 8, 1>}, {transform_indices = @transform_3, window_bounds = array<i64: 1, 8, 128>}]} {
    %c0 = arith.constant 0 : index
    %c0_0 = arith.constant 0 : index
    %c0_1 = arith.constant 0 : index
    %0 = vector.load %arg2[%c0, %c0_0, %c0_1] : memref<1x8x128xf32, #tpu.memory_space<vmem>>, vector<1x8x128xf32>
    %1 = vector.shape_cast %0 : vector<1x8x128xf32> to vector<8x128xf32>
    %c0_2 = arith.constant 0 : index
    %c0_3 = arith.constant 0 : index
    %c0_4 = arith.constant 0 : index
    %2 = vector.load %arg3[%c0_2, %c0_3, %c0_4] : memref<1x8x1xf32, #tpu.memory_space<vmem>>, vector<1x8x1xf32>
    %3 = vector.shape_cast %2 : vector<1x8x1xf32> to vector<8x1xf32>
    %4 = vector.broadcast %3 : vector<8x1xf32> to vector<8x128xf32>
    %5 = arith.subf %1, %4 : vector<8x128xf32>
    %c0_5 = arith.constant 0 : index
    %c0_6 = arith.constant 0 : index
    %c0_7 = arith.constant 0 : index
    %6 = vector.load %arg4[%c0_5, %c0_6, %c0_7] : memref<1x8x1xf32, #tpu.memory_space<vmem>>, vector<1x8x1xf32>
    %7 = vector.shape_cast %6 : vector<1x8x1xf32> to vector<8x1xf32>
    %8 = vector.broadcast %7 : vector<8x1xf32> to vector<8x128xf32>
    %9 = arith.mulf %5, %8 : vector<8x128xf32>
    %cst = arith.constant 0.000000e+00 : f32
    %10 = vector.broadcast %cst : f32 to vector<8x128xf32>
    %11 = arith.cmpf oge, %9, %10 : vector<8x128xf32>
    %cst_8 = arith.constant 0.00999999977 : f32
    %12 = vector.broadcast %cst_8 : f32 to vector<8x128xf32>
    %13 = arith.mulf %12, %9 : vector<8x128xf32>
    %14 = arith.select %11, %9, %13 : vector<8x128xi1>, vector<8x128xf32>
    %c0_9 = arith.constant 0 : index
    %c0_10 = arith.constant 0 : index
    %c0_11 = arith.constant 0 : index
    %15 = vector.load %arg5[%c0_9, %c0_10, %c0_11] : memref<1x8x128xf32, #tpu.memory_space<vmem>>, vector<1x8x128xf32>
    %16 = vector.shape_cast %15 : vector<1x8x128xf32> to vector<8x128xf32>
    %17 = vector.shape_cast %14 : vector<8x128xf32> to vector<1x8x128xf32>
    tpu.vector_store %arg5[%c0_9, %c0_10, %c0_11], %17 {strides = array<i32>} : memref<1x8x128xf32, #tpu.memory_space<vmem>>, vector<1x8x128xf32>,
    return
  }
  func.func @transform_0(%arg0: i32, %arg1: i32) -> (i32, i32, i32) {
    %c0_i32 = arith.constant 0 : i32
    %c0_i32_0 = arith.constant 0 : i32
    return %arg0, %c0_i32, %arg1 : i32, i32, i32
  }
  func.func @transform_1(%arg0: i32, %arg1: i32) -> (i32, i32, i32) {
    %c0_i32 = arith.constant 0 : i32
    %c0_i32_0 = arith.constant 0 : i32
    %c0_i32_1 = arith.constant 0 : i32
    return %arg0, %c0_i32, %c0_i32_0 : i32, i32, i32
  }
  func.func @transform_2(%arg0: i32, %arg1: i32) -> (i32, i32, i32) {
    %c0_i32 = arith.constant 0 : i32
    %c0_i32_0 = arith.constant 0 : i32
    %c0_i32_1 = arith.constant 0 : i32
    return %arg0, %c0_i32, %c0_i32_0 : i32, i32, i32
  }
  func.func @transform_3(%arg0: i32, %arg1: i32) -> (i32, i32, i32) {
    %c0_i32 = arith.constant 0 : i32
    %c0_i32_0 = arith.constant 0 : i32
    return %arg0, %c0_i32, %arg1 : i32, i32, i32
  }
}

module attributes {stable_mosaic.version = 11 : i64} {
  func.func @_conv_stats_kernel(%arg0: i32, %arg1: i32, %arg2: memref<1x112x128xbf16, #tpu.memory_space<vmem>>, %arg3: memref<8x128xbf16, #tpu.memory_space<vmem>>, %arg4: memref<1x8x128xf32, #tpu.memory_space<vmem>>, %arg5: memref<1x8x1xf32, #tpu.memory_space<vmem>>, %arg6: memref<1x8x1xf32, #tpu.memory_space<vmem>>, %arg7: memref<8x1xf32, #tpu.memory_space<vmem>>, %arg8: memref<8x1xf32, #tpu.memory_space<vmem>>) attributes {dimension_semantics = [#tpu.dimension_semantics<parallel>, #tpu.dimension_semantics<arbitrary>], iteration_bounds = array<i64: 2, 4>, scalar_prefetch = 0 : i64, scratch_operands = 2 : i64, tpu.core_type = #tpu.core_type<tc>, window_params = [{transform_indices = @transform_0, window_bounds = array<i64: 1, 112, 128>}, {pipeline_mode = #tpu.pipeline_mode<synchronous>, transform_indices = @transform_1, window_bounds = array<i64: 8, 128>}, {transform_indices = @transform_2, window_bounds = array<i64: 1, 8, 128>}, {transform_indices = @transform_3, window_bounds = array<i64: 1, 8, 1>}, {transform_indices = @transform_4, window_bounds = array<i64: 1, 8, 1>}]} {
    %c0_i32 = arith.constant 0 : i32
    %0 = arith.cmpi eq, %arg1, %c0_i32 : i32
    %1 = arith.extui %0 : i1 to i32
    %c0_i32_0 = arith.constant 0 : i32
    %2 = arith.cmpi ne, %1, %c0_i32_0 : i32
    scf.if %2 {
      %cst_19 = arith.constant 0.000000e+00 : f32
      %24 = vector.broadcast %cst_19 : f32 to vector<8x1xf32>
      %c0_20 = arith.constant 0 : index
      %c0_21 = arith.constant 0 : index
      %25 = vector.load %arg7[%c0_20, %c0_21] : memref<8x1xf32, #tpu.memory_space<vmem>>, vector<8x1xf32>
      tpu.vector_store %arg7[%c0_20, %c0_21], %24 {strides = array<i32>} : memref<8x1xf32, #tpu.memory_space<vmem>>, vector<8x1xf32>,
      %cst_22 = arith.constant 0.000000e+00 : f32
      %26 = vector.broadcast %cst_22 : f32 to vector<8x1xf32>
      %c0_23 = arith.constant 0 : index
      %c0_24 = arith.constant 0 : index
      %27 = vector.load %arg8[%c0_23, %c0_24] : memref<8x1xf32, #tpu.memory_space<vmem>>, vector<8x1xf32>
      tpu.vector_store %arg8[%c0_23, %c0_24], %26 {strides = array<i32>} : memref<8x1xf32, #tpu.memory_space<vmem>>, vector<8x1xf32>,
    } else {
    }
    %c0 = arith.constant 0 : index
    %c0_1 = arith.constant 0 : index
    %3 = vector.load %arg3[%c0, %c0_1] : memref<8x128xbf16, #tpu.memory_space<vmem>>, vector<8x112xbf16>
    %c0_2 = arith.constant 0 : index
    %c0_3 = arith.constant 0 : index
    %c0_4 = arith.constant 0 : index
    %4 = vector.load %arg2[%c0_2, %c0_3, %c0_4] : memref<1x112x128xbf16, #tpu.memory_space<vmem>>, vector<1x112x128xbf16>
    %5 = vector.shape_cast %4 : vector<1x112x128xbf16> to vector<112x128xbf16>
    %cst = arith.constant dense<0.000000e+00> : vector<8x128xf32>
    %6 = tpu.matmul %3, %5, %cst {dimension_numbers = #tpu.dot_dimension_numbers<[1], [0], [0], [1], [0, 0, 1, 1], [], []>} : vector<8x112xbf16>, vector<112x128xbf16>, vector<8x128xf32> -> vector<8x128xf32>
    %c0_5 = arith.constant 0 : index
    %c0_6 = arith.constant 0 : index
    %c0_7 = arith.constant 0 : index
    %7 = vector.load %arg4[%c0_5, %c0_6, %c0_7] : memref<1x8x128xf32, #tpu.memory_space<vmem>>, vector<1x8x128xf32>
    %8 = vector.shape_cast %7 : vector<1x8x128xf32> to vector<8x128xf32>
    %9 = vector.shape_cast %6 : vector<8x128xf32> to vector<1x8x128xf32>
    tpu.vector_store %arg4[%c0_5, %c0_6, %c0_7], %9 {strides = array<i32>} : memref<1x8x128xf32, #tpu.memory_space<vmem>>, vector<1x8x128xf32>,
    %c0_8 = arith.constant 0 : index
    %c0_9 = arith.constant 0 : index
    %10 = vector.load %arg7[%c0_8, %c0_9] : memref<8x1xf32, #tpu.memory_space<vmem>>, vector<8x1xf32>
    %cst_10 = arith.constant dense<0.000000e+00> : vector<8xf32>
    %11 = vector.multi_reduction <add>, %6, %cst_10 [1] : vector<8x128xf32> to vector<8xf32>
    %12 = vector.shape_cast %11 : vector<8xf32> to vector<8x1xf32>
    %13 = arith.addf %10, %12 : vector<8x1xf32>
    %c0_11 = arith.constant 0 : index
    %c0_12 = arith.constant 0 : index
    %14 = vector.load %arg7[%c0_11, %c0_12] : memref<8x1xf32, #tpu.memory_space<vmem>>, vector<8x1xf32>
    tpu.vector_store %arg7[%c0_11, %c0_12], %13 {strides = array<i32>} : memref<8x1xf32, #tpu.memory_space<vmem>>, vector<8x1xf32>,
    %c0_13 = arith.constant 0 : index
    %c0_14 = arith.constant 0 : index
    %15 = vector.load %arg8[%c0_13, %c0_14] : memref<8x1xf32, #tpu.memory_space<vmem>>, vector<8x1xf32>
    %16 = arith.mulf %6, %6 : vector<8x128xf32>
    %cst_15 = arith.constant dense<0.000000e+00> : vector<8xf32>
    %17 = vector.multi_reduction <add>, %16, %cst_15 [1] : vector<8x128xf32> to vector<8xf32>
    %18 = vector.shape_cast %17 : vector<8xf32> to vector<8x1xf32>
    %19 = arith.addf %15, %18 : vector<8x1xf32>
    %c0_16 = arith.constant 0 : index
    %c0_17 = arith.constant 0 : index
    %20 = vector.load %arg8[%c0_16, %c0_17] : memref<8x1xf32, #tpu.memory_space<vmem>>, vector<8x1xf32>
    tpu.vector_store %arg8[%c0_16, %c0_17], %19 {strides = array<i32>} : memref<8x1xf32, #tpu.memory_space<vmem>>, vector<8x1xf32>,
    %c3_i32 = arith.constant 3 : i32
    %21 = arith.cmpi eq, %arg1, %c3_i32 : i32
    %22 = arith.extui %21 : i1 to i32
    %c0_i32_18 = arith.constant 0 : i32
    %23 = arith.cmpi ne, %22, %c0_i32_18 : i32
    scf.if %23 {
      %c0_19 = arith.constant 0 : index
      %c0_20 = arith.constant 0 : index
      %24 = vector.load %arg7[%c0_19, %c0_20] : memref<8x1xf32, #tpu.memory_space<vmem>>, vector<8x1xf32>
      %cst_21 = arith.constant 0.001953125 : f32
      %25 = vector.broadcast %cst_21 : f32 to vector<8x1xf32>
      %26 = arith.mulf %24, %25 : vector<8x1xf32>
      %c0_22 = arith.constant 0 : index
      %c0_23 = arith.constant 0 : index
      %27 = vector.load %arg8[%c0_22, %c0_23] : memref<8x1xf32, #tpu.memory_space<vmem>>, vector<8x1xf32>
      %cst_24 = arith.constant 0.001953125 : f32
      %28 = vector.broadcast %cst_24 : f32 to vector<8x1xf32>
      %29 = arith.mulf %27, %28 : vector<8x1xf32>
      %30 = arith.mulf %26, %26 : vector<8x1xf32>
      %31 = arith.subf %29, %30 : vector<8x1xf32>
      %cst_25 = arith.constant 0.000000e+00 : f32
      %32 = vector.broadcast %cst_25 : f32 to vector<8x1xf32>
      %33 = arith.maximumf %31, %32 : vector<8x1xf32>
      %c0_26 = arith.constant 0 : index
      %c0_27 = arith.constant 0 : index
      %c0_28 = arith.constant 0 : index
      %34 = vector.load %arg5[%c0_26, %c0_27, %c0_28] : memref<1x8x1xf32, #tpu.memory_space<vmem>>, vector<1x8x1xf32>
      %35 = vector.shape_cast %34 : vector<1x8x1xf32> to vector<8x1xf32>
      %36 = vector.shape_cast %26 : vector<8x1xf32> to vector<1x8x1xf32>
      tpu.vector_store %arg5[%c0_26, %c0_27, %c0_28], %36 {strides = array<i32>} : memref<1x8x1xf32, #tpu.memory_space<vmem>>, vector<1x8x1xf32>,
      %cst_29 = arith.constant 9.99999974E-6 : f32
      %37 = vector.broadcast %cst_29 : f32 to vector<8x1xf32>
      %38 = arith.addf %33, %37 : vector<8x1xf32>
      %39 = math.rsqrt %38 : vector<8x1xf32>
      %c0_30 = arith.constant 0 : index
      %c0_31 = arith.constant 0 : index
      %c0_32 = arith.constant 0 : index
      %40 = vector.load %arg6[%c0_30, %c0_31, %c0_32] : memref<1x8x1xf32, #tpu.memory_space<vmem>>, vector<1x8x1xf32>
      %41 = vector.shape_cast %40 : vector<1x8x1xf32> to vector<8x1xf32>
      %42 = vector.shape_cast %39 : vector<8x1xf32> to vector<1x8x1xf32>
      tpu.vector_store %arg6[%c0_30, %c0_31, %c0_32], %42 {strides = array<i32>} : memref<1x8x1xf32, #tpu.memory_space<vmem>>, vector<1x8x1xf32>,
    } else {
    }
    return
  }
  func.func @transform_0(%arg0: i32, %arg1: i32) -> (i32, i32, i32) {
    %c0_i32 = arith.constant 0 : i32
    %c0_i32_0 = arith.constant 0 : i32
    return %arg0, %c0_i32, %arg1 : i32, i32, i32
  }
  func.func @transform_1(%arg0: i32, %arg1: i32) -> (i32, i32) {
    %c0_i32 = arith.constant 0 : i32
    %c0_i32_0 = arith.constant 0 : i32
    %c0_i32_1 = arith.constant 0 : i32
    return %c0_i32, %c0_i32_0 : i32, i32
  }
  func.func @transform_2(%arg0: i32, %arg1: i32) -> (i32, i32, i32) {
    %c0_i32 = arith.constant 0 : i32
    %c0_i32_0 = arith.constant 0 : i32
    return %arg0, %c0_i32, %arg1 : i32, i32, i32
  }
  func.func @transform_3(%arg0: i32, %arg1: i32) -> (i32, i32, i32) {
    %c0_i32 = arith.constant 0 : i32
    %c0_i32_0 = arith.constant 0 : i32
    %c0_i32_1 = arith.constant 0 : i32
    return %arg0, %c0_i32, %c0_i32_0 : i32, i32, i32
  }
  func.func @transform_4(%arg0: i32, %arg1: i32) -> (i32, i32, i32) {
    %c0_i32 = arith.constant 0 : i32
    %c0_i32_0 = arith.constant 0 : i32
    %c0_i32_1 = arith.constant 0 : i32
    return %arg0, %c0_i32, %c0_i32_0 : i32, i32, i32
  }
}

</mosaic_0001>

<llo_original>
// kernel: basic_conv.3
$region0: #{basic_conv.3}
  #allocation0 [shape = 'u32[]', space=smem, size = 0x4, offset = 0x4, fixed_abs, tag = 'smem constant byte address 0x4 - core index']
  #allocation1 [shape = 'u32[72,128]{1,0:T(1,128)}', space=vmem, size = 0x9000, scoped, tag = 'internal scratch']
  %s0 = inlined_call_operand.vmem [shape: f32[2,8,512], index: 0, kind: input, shape index: {}]
  %s1 = inlined_call_operand.vmem [shape: f32[2,8,1], index: 1, kind: input, shape index: {}]
  %s2 = inlined_call_operand.vmem [shape: f32[2,8,1], index: 2, kind: input, shape index: {}]
  %s3 = inlined_call_operand.vmem [shape: f32[2,8,512], index: 3, kind: output, shape index: {}]
  %s4 = sld [smem:[#allocation0]]
  $region45: #{basic_conv.3} parent=0
    _
  %s6 = ssub.s32 1, %s4
  %s7 = scalar_select 0, %s6, %s4
  loop: start=0, step=1, limit=10
  $region2: #{basic_conv.3} parent=0 // loop_pre_header
    _
  $region3: #{basic_conv.3} parent=0 // loop_header
    %s9 = sphi 0, %s13
    %p10 = scmp.ge.s32.totalorder %s9, 10
    %s16 = sphi 0, %s28
    %s17 = sphi 0, %s24
    %s18 = sphi 0, %s16
    %s19 = sphi 0, %s17
    %s20 = sphi 0, %s18
    %s21 = sphi 0, %s19
    %s33 = sphi 0, %s35
    %s36 = sphi 0, %s33
    %s37 = sphi 0, %s36
    %s53 = sphi 0, %s37
    %s59 = sphi 0, %s61
    %s62 = sphi 0, %s59
    %s63 = sphi 0, %s62
    %s79 = sphi 0, %s63
    %s85 = sphi 0, %s87
    %s88 = sphi 0, %s85
    %s89 = sphi 0, %s88
    %s105 = sphi 0, %s89
    %s113 = sphi 0, %s115
    %s116 = sphi 0, %s113
    %s117 = sphi 0, %s116
    %s133 = sphi 0, %s117
  $region4: #{basic_conv.3} parent=0 // loop_header_branch
    %12 = sbr.rel (%p10) target = $region8
  $region5: #{basic_conv.3} parent=0 // loop_body
    %s14 = ssub.s32 %s9, 1
    %s15 = ssub.s32 %s9, 2
    %s22 = sadd.s32 1, %s17
    %p23 = scmp.ge.s32.totalorder %s22, 4
    %s24 = scalar_select %p23, 0, %s22
    %s25 = sadd.s32 1, %s16
    %s26 = scalar_select %p23, %s25, %s16
    %p27 = scmp.ge.s32.totalorder %s26, 2
    %s28 = scalar_select %p27, 0, %s26
    %s29 = ssub.s32 %s16, %s28
    %s30 = ssub.s32 %s17, %s24
    %s31 = sor.u32 %s29, %s30
    %p32 = scmp.eq.s32.totalorder %s31, 0
    %s34 = sadd.s32 %s33, 1
    %s35 = scalar_select %p32, %s33, %s34
    %p38 = pneg %p32
    %p39 = scmp.eq.s32.totalorder %s9, 7
    %p40 = por %p38, %p39
    %p41 = scmp.ne.s32.totalorder %s33, %s36
    %p42 = scmp.eq.s32.totalorder %s9, 0
    %p43 = por %p41, %p42
    %p44 = scmp.ne.s32.totalorder %s33, %s36
    %p45 = scmp.eq.s32.totalorder %s14, 7
    %p46 = por %p44, %p45
    %p47 = scmp.ne.s32.totalorder %s36, %s37
    %p48 = scmp.eq.s32.totalorder %s14, 0
    %p49 = por %p47, %p48
    %p50 = scmp.ne.s32.totalorder %s36, %s37
    %p51 = scmp.eq.s32.totalorder %s15, 7
    %p52 = por %p50, %p51
    %p54 = scmp.ne.s32.totalorder %s37, %s53
    %p55 = scmp.eq.s32.totalorder %s15, 0
    %p56 = por %p54, %p55
    %s57 = ssub.s32 %s16, %s28
    %p58 = scmp.eq.s32.totalorder %s57, 0
    %s60 = sadd.s32 %s59, 1
    %s61 = scalar_select %p58, %s59, %s60
    %p64 = pneg %p58
    %p65 = scmp.eq.s32.totalorder %s9, 7
    %p66 = por %p64, %p65
    %p67 = scmp.ne.s32.totalorder %s59, %s62
    %p68 = scmp.eq.s32.totalorder %s9, 0
    %p69 = por %p67, %p68
    %p70 = scmp.ne.s32.totalorder %s59, %s62
    %p71 = scmp.eq.s32.totalorder %s14, 7
    %p72 = por %p70, %p71
    %p73 = scmp.ne.s32.totalorder %s62, %s63
    %p74 = scmp.eq.s32.totalorder %s14, 0
    %p75 = por %p73, %p74
    %p76 = scmp.ne.s32.totalorder %s62, %s63
    %p77 = scmp.eq.s32.totalorder %s15, 7
    %p78 = por %p76, %p77
    %p80 = scmp.ne.s32.totalorder %s63, %s79
    %p81 = scmp.eq.s32.totalorder %s15, 0
    %p82 = por %p80, %p81
    %s83 = ssub.s32 %s16, %s28
    %p84 = scmp.eq.s32.totalorder %s83, 0
    %s86 = sadd.s32 %s85, 1
    %s87 = scalar_select %p84, %s85, %s86
    %p90 = pneg %p84
    %p91 = scmp.eq.s32.totalorder %s9, 7
    %p92 = por %p90, %p91
    %p93 = scmp.ne.s32.totalorder %s85, %s88
    %p94 = scmp.eq.s32.totalorder %s9, 0
    %p95 = por %p93, %p94
    %p96 = scmp.ne.s32.totalorder %s85, %s88
    %p97 = scmp.eq.s32.totalorder %s14, 7
    %p98 = por %p96, %p97
    %p99 = scmp.ne.s32.totalorder %s88, %s89
    %p100 = scmp.eq.s32.totalorder %s14, 0
    %p101 = por %p99, %p100
    %p102 = scmp.ne.s32.totalorder %s88, %s89
    %p103 = scmp.eq.s32.totalorder %s15, 7
    %p104 = por %p102, %p103
    %p106 = scmp.ne.s32.totalorder %s89, %s105
    %p107 = scmp.eq.s32.totalorder %s15, 0
    %p108 = por %p106, %p107
    %s109 = ssub.s32 %s16, %s28
    %s110 = ssub.s32 %s17, %s24
    %s111 = sor.u32 %s109, %s110
    %p112 = scmp.eq.s32.totalorder %s111, 0
    %s114 = sadd.s32 %s113, 1
    %s115 = scalar_select %p112, %s113, %s114
    %p118 = pneg %p112
    %p119 = scmp.eq.s32.totalorder %s9, 7
    %p120 = por %p118, %p119
    %p121 = scmp.ne.s32.totalorder %s113, %s116
    %p122 = scmp.eq.s32.totalorder %s9, 0
    %p123 = por %p121, %p122
    %p124 = scmp.ne.s32.totalorder %s113, %s116
    %p125 = scmp.eq.s32.totalorder %s14, 7
    %p126 = por %p124, %p125
    %p127 = scmp.ne.s32.totalorder %s116, %s117
    %p128 = scmp.eq.s32.totalorder %s14, 0
    %p129 = por %p127, %p128
    %p130 = scmp.ne.s32.totalorder %s116, %s117
    %p131 = scmp.eq.s32.totalorder %s15, 7
    %p132 = por %p130, %p131
    %p134 = scmp.ne.s32.totalorder %s117, %s133
    %p135 = scmp.eq.s32.totalorder %s15, 0
    %p136 = por %p134, %p135
    %p137 = scmp.le.s32.totalorder 1, %s9
    %p138 = scmp.lt.s32.totalorder %s9, 9
    %p139 = pnand %p137, %p138
    %p140 = pneg %p139
    // Predicated region
    $region9: #{basic_conv.3} parent=5 // pred_check
      _
    $region10: #{basic_conv.3} parent=5 // pred_check_branch
      %142 = sbr.rel (%p139) target = $region12
    $region11: #{basic_conv.3} parent=5 // pred_region
      %s143 = ssub.s32 %s9, 1
    $region12: #{basic_conv.3} parent=5 // pred_fallthru
      _
    %p144 = scmp.lt.s32.totalorder %s9, 8
    // Predicated region
    $region13: #{basic_conv.3} parent=5 // pred_check
      %p145 = pneg %p144
    $region14: #{basic_conv.3} parent=5 // pred_check_branch
      %147 = sbr.rel (%p145) target = $region16
    $region15: #{basic_conv.3} parent=5 // pred_region
      // Predicated region
      $region17: #{basic_conv.3} parent=15 // pred_check
        %p148 = pneg %p43
      $region18: #{basic_conv.3} parent=15 // pred_check_branch
        %150 = sbr.rel (%p148) target = $region20
      $region19: #{basic_conv.3} parent=15 // pred_region
        %p151 = scmp.lt.s32.totalorder %s16, 1
        %s152 = scalar_select %p151, %s16, 1
        %p153 = scmp.lt.s32.totalorder %s17, 3
        %s154 = scalar_select %p153, %s17, 3
        %s155 = smul.addr %s152, 4
        %s156 = sadd.s32 %s154, %s155
        %s157 = smul.addr %s156, 8
        %s158 = scalar_lea.vmem %s0, %s157
      $region20: #{basic_conv.3} parent=15 // pred_fallthru
        _
      // Predicated region
      $region21: #{basic_conv.3} parent=15 // pred_check
        %p159 = pneg %p69
      $region22: #{basic_conv.3} parent=15 // pred_check_branch
        %161 = sbr.rel (%p159) target = $region24
      $region23: #{basic_conv.3} parent=15 // pred_region
        %p162 = scmp.lt.s32.totalorder %s16, 1
        %s163 = scalar_select %p162, %s16, 1
        %s164 = smul.addr %s163, 8
        %s165 = scalar_lea.vmem %s1, %s164
      $region24: #{basic_conv.3} parent=15 // pred_fallthru
        _
      // Predicated region
      $region25: #{basic_conv.3} parent=15 // pred_check
        %p166 = pneg %p95
      $region26: #{basic_conv.3} parent=15 // pred_check_branch
        %168 = sbr.rel (%p166) target = $region28
      $region27: #{basic_conv.3} parent=15 // pred_region
        %p169 = scmp.lt.s32.totalorder %s16, 1
        %s170 = scalar_select %p169, %s16, 1
        %s171 = smul.addr %s170, 8
        %s172 = scalar_lea.vmem %s2, %s171
      $region28: #{basic_conv.3} parent=15 // pred_fallthru
        _
    $region16: #{basic_conv.3} parent=5 // pred_fallthru
      _
    %p173 = scmp.le.s32.totalorder 1, %s9
    %p174 = scmp.lt.s32.totalorder %s9, 9
    %p175 = pnand %p173, %p174
    %p176 = pneg %p175
    // Predicated region
    $region29: #{basic_conv.3} parent=5 // pred_check
      _
    $region30: #{basic_conv.3} parent=5 // pred_check_branch
      %178 = sbr.rel (%p175) target = $region32
    $region31: #{basic_conv.3} parent=5 // pred_region
      %s179 = ssub.s32 %s9, 1
      %p180 = scmp.lt.s32.totalorder %s18, 1
      %s181 = scalar_select %p180, %s18, 1
      %p182 = scmp.lt.s32.totalorder %s19, 3
      %s183 = scalar_select %p182, %s19, 3
      %s184 = smul.addr %s181, 4
      %s185 = sadd.s32 %s183, %s184
      %s186 = smul.addr %s185, 8
      %s187 = scalar_lea.vmem %s0, %s186
      %p188 = pneg %p49
      %p189 = pneg %p46
      %p190 = scmp.lt.s32.totalorder %s18, 1
      %s191 = scalar_select %p190, %s18, 1
      %s192 = smul.addr %s191, 8
      %s193 = scalar_lea.vmem %s1, %s192
      %p194 = pneg %p75
      %p195 = pneg %p72
      %p196 = scmp.lt.s32.totalorder %s18, 1
      %s197 = scalar_select %p196, %s18, 1
      %s198 = smul.addr %s197, 8
      %s199 = scalar_lea.vmem %s2, %s198
      %p200 = pneg %p101
      %p201 = pneg %p98
      %p202 = pneg %p129
      %p203 = pneg %p126
      %p204 = scmp.lt.s32.totalorder %s18, 1
      %s205 = scalar_select %p204, %s18, 1
      %p206 = scmp.lt.s32.totalorder %s19, 3
      %s207 = scalar_select %p206, %s19, 3
      %s208 = smul.addr %s205, 4
      %s209 = sadd.s32 %s207, %s208
      %s210 = smul.addr %s209, 8
      %s211 = scalar_lea.vmem %s3, %s210
      %p212 = scmp.lt.s32.totalorder %s18, 1
      %s213 = scalar_select %p212, %s18, 1
      %p214 = scmp.lt.s32.totalorder %s19, 3
      %s215 = scalar_select %p214, %s19, 3
      %s216 = smul.addr %s213, 4
      %s217 = sadd.s32 %s215, %s216
      %s218 = smul.addr %s217, 8
      %s219 = scalar_lea.vmem %s0, %s218
      %p220 = scmp.lt.s32.totalorder %s18, 1
      %s221 = scalar_select %p220, %s18, 1
      %s222 = smul.addr %s221, 8
      %s223 = scalar_lea.vmem %s1, %s222
      %p224 = scmp.lt.s32.totalorder %s18, 1
      %s225 = scalar_select %p224, %s18, 1
      %s226 = smul.addr %s225, 8
      %s227 = scalar_lea.vmem %s2, %s226
      %p228 = scmp.lt.s32.totalorder %s18, 1
      %s229 = scalar_select %p228, %s18, 1
      %p230 = scmp.lt.s32.totalorder %s19, 3
      %s231 = scalar_select %p230, %s19, 3
      %s232 = smul.addr %s229, 4
      %s233 = sadd.s32 %s231, %s232
      %s234 = smul.addr %s233, 8
      %s235 = scalar_lea.vmem %s3, %s234
      %v236 = vld [vmem:[%s219] sm:$0xff]
      %v237 = vld [vmem:[%s223] sm:$0xff]
      %239 = vset.pattern.permute.xlu0 0
      %240 = vperm.xlu0 %239, %v237
      %v241 = vpop.permute.xlu0 %240
      %v243 = vsub.f32 %v236, %v241
      %v244 = vld [vmem:[%s227] sm:$0xff]
      %246 = vset.pattern.permute.xlu0 0
      %247 = vperm.xlu0 %246, %v244
      %v248 = vpop.permute.xlu0 %247
      %v250 = vmul.f32 %v243, %v248
      %vm251 = vcmp.ge.f32.partialorder %v250, 0.0
      %v252 = vmul.f32 %v250, 0.01
      %v253 = vsel %vm251, %v250, %v252
      %254 = vst [vmem:[%s235] sm:$0xff] %v253
      %p255 = scmp.lt.s32.totalorder %s18, 1
      %s256 = scalar_select %p255, %s18, 1
      %p257 = scmp.lt.s32.totalorder %s19, 3
      %s258 = scalar_select %p257, %s19, 3
      %s259 = smul.addr %s256, 4
      %s260 = sadd.s32 %s258, %s259
      %s261 = smul.addr %s260, 8
      %s262 = scalar_lea.vmem %s3, %s261
      // Predicated region
      $region33: #{basic_conv.3} parent=31 // pred_check
        %p263 = pneg %p126
      $region34: #{basic_conv.3} parent=31 // pred_check_branch
        %265 = sbr.rel (%p263) target = $region36
      $region35: #{basic_conv.3} parent=31 // pred_region
        _
      $region36: #{basic_conv.3} parent=31 // pred_fallthru
        _
    $region32: #{basic_conv.3} parent=5 // pred_fallthru
      _
    %p266 = scmp.le.s32.totalorder 2, %s9
    // Predicated region
    $region37: #{basic_conv.3} parent=5 // pred_check
      %p267 = pneg %p266
    $region38: #{basic_conv.3} parent=5 // pred_check_branch
      %269 = sbr.rel (%p267) target = $region40
    $region39: #{basic_conv.3} parent=5 // pred_region
      %s270 = ssub.s32 %s9, 2
      // Predicated region
      $region41: #{basic_conv.3} parent=39 // pred_check
        %p271 = pneg %p132
      $region42: #{basic_conv.3} parent=39 // pred_check_branch
        %273 = sbr.rel (%p271) target = $region44
      $region43: #{basic_conv.3} parent=39 // pred_region
        %p274 = scmp.lt.s32.totalorder %s20, 1
        %s275 = scalar_select %p274, %s20, 1
        %p276 = scmp.lt.s32.totalorder %s21, 3
        %s277 = scalar_select %p276, %s21, 3
        %s278 = smul.addr %s275, 4
        %s279 = sadd.s32 %s277, %s278
        %s280 = smul.addr %s279, 8
        %s281 = scalar_lea.vmem %s3, %s280
      $region44: #{basic_conv.3} parent=39 // pred_fallthru
        _
    $region40: #{basic_conv.3} parent=5 // pred_fallthru
      _
  $region6: #{basic_conv.3} parent=0 // loop_footer
    %s13 = sadd.s32 1, %s9
  $region7: #{basic_conv.3} parent=0 // loop_footer_branch
    %8 = sbr.rel target = $region3
  $region8: #{basic_conv.3} parent=0 // loop_exit
    _

// kernel: basic_conv.2
$region0: #{basic_conv.2}
  #allocation0 [shape = 'u32[]', space=smem, size = 0x4, offset = 0x4, fixed_abs, tag = 'smem constant byte address 0x4 - core index']
  #allocation1 [shape = 'u32[72,128]{1,0:T(1,128)}', space=vmem, size = 0x9000, scoped, tag = 'internal scratch']
  #allocation2 [shape = 'f32[8,1]{1,0:T(8,128)}', space=vmem, size = 0x1000, scoped, tag = 'scratch operand']
  #allocation3 [shape = 'f32[8,1]{1,0:T(8,128)}', space=vmem, size = 0x1000, scoped, tag = 'scratch operand']
  %s0 = inlined_call_operand.vmem [shape: bf16[2,112,512], index: 0, kind: input, shape index: {}]
  %s1 = inlined_call_operand.vmem [shape: bf16[8,128], index: 1, kind: input, shape index: {}]
  %s2 = inlined_call_operand.vmem [shape: f32[2,8,512], index: 2, kind: output, shape index: {0}]
  %s3 = inlined_call_operand.vmem [shape: f32[2,8,1], index: 3, kind: output, shape index: {1}]
  %s4 = inlined_call_operand.vmem [shape: f32[2,8,1], index: 4, kind: output, shape index: {2}]
  %5 = xla_tuple %s2, %s3, %s4
  %s6 = sld [smem:[#allocation0]]
  $region106: #{basic_conv.2} parent=0
    _
  %s8 = ssub.s32 1, %s6
  %s9 = scalar_select 0, %s8, %s6
  $region1: #{basic_conv.2} parent=0
    #allocation4 [shape = 'u8[57344]{0}', space=vmem, size = 0xe000, scoped, tag = 'input window, operand 0']
    loop: start=0, step=1, limit=10
    $region2: #{basic_conv.2} parent=1 // loop_pre_header
      _
    $region3: #{basic_conv.2} parent=1 // loop_header
      %s11 = sphi 0, %s15
      %p12 = scmp.ge.s32.totalorder %s11, 10
      %s18 = sphi 0, %s30
      %s19 = sphi 0, %s26
      %s20 = sphi 0, %s18
      %s21 = sphi 0, %s19
      %s22 = sphi 0, %s20
      %s23 = sphi 0, %s21
      %s35 = sphi 0, %s37
      %s38 = sphi 0, %s35
      %s39 = sphi 0, %s38
      %s55 = sphi 0, %s39
      %s59 = sphi 0, %s59
      %s61 = sphi 0, %s59
      %s62 = sphi 0, %s61
      %s76 = sphi 0, %s62
      %s84 = sphi 0, %s86
      %s87 = sphi 0, %s84
      %s88 = sphi 0, %s87
      %s104 = sphi 0, %s88
      %s110 = sphi 0, %s112
      %s113 = sphi 0, %s110
      %s114 = sphi 0, %s113
      %s130 = sphi 0, %s114
      %s136 = sphi 0, %s138
      %s139 = sphi 0, %s136
      %s140 = sphi 0, %s139
      %s156 = sphi 0, %s140
    $region4: #{basic_conv.2} parent=1 // loop_header_branch
      %14 = sbr.rel (%p12) target = $region8
    $region5: #{basic_conv.2} parent=1 // loop_body
      %s16 = ssub.s32 %s11, 1
      %s17 = ssub.s32 %s11, 2
      %s24 = sadd.s32 1, %s19
      %p25 = scmp.ge.s32.totalorder %s24, 4
      %s26 = scalar_select %p25, 0, %s24
      %s27 = sadd.s32 1, %s18
      %s28 = scalar_select %p25, %s27, %s18
      %p29 = scmp.ge.s32.totalorder %s28, 2
      %s30 = scalar_select %p29, 0, %s28
      %s31 = ssub.s32 %s18, %s30
      %s32 = ssub.s32 %s19, %s26
      %s33 = sor.u32 %s31, %s32
      %p34 = scmp.eq.s32.totalorder %s33, 0
      %s36 = sadd.s32 %s35, 1
      %s37 = scalar_select %p34, %s35, %s36
      %p40 = pneg %p34
      %p41 = scmp.eq.s32.totalorder %s11, 7
      %p42 = por %p40, %p41
      %p43 = scmp.ne.s32.totalorder %s35, %s38
      %p44 = scmp.eq.s32.totalorder %s11, 0
      %p45 = por %p43, %p44
      %p46 = scmp.ne.s32.totalorder %s35, %s38
      %p47 = scmp.eq.s32.totalorder %s16, 7
      %p48 = por %p46, %p47
      %p49 = scmp.ne.s32.totalorder %s38, %s39
      %p50 = scmp.eq.s32.totalorder %s16, 0
      %p51 = por %p49, %p50
      %p52 = scmp.ne.s32.totalorder %s38, %s39
      %p53 = scmp.eq.s32.totalorder %s17, 7
      %p54 = por %p52, %p53
      %p56 = scmp.ne.s32.totalorder %s39, %s55
      %p57 = scmp.eq.s32.totalorder %s17, 0
      %p58 = por %p56, %p57
      %s60 = sadd.s32 %s59, 1
      %p63 = scmp.eq.s32.totalorder %s11, 7
      %p64 = scmp.ne.s32.totalorder %s59, %s61
      %p65 = scmp.eq.s32.totalorder %s11, 0
      %p66 = por %p64, %p65
      %p67 = scmp.ne.s32.totalorder %s59, %s61
      %p68 = scmp.eq.s32.totalorder %s16, 7
      %p69 = por %p67, %p68
      %p70 = scmp.ne.s32.totalorder %s61, %s62
      %p71 = scmp.eq.s32.totalorder %s16, 0
      %p72 = por %p70, %p71
      %p73 = scmp.ne.s32.totalorder %s61, %s62
      %p74 = scmp.eq.s32.totalorder %s17, 7
      %p75 = por %p73, %p74
      %p77 = scmp.ne.s32.totalorder %s62, %s76
      %p78 = scmp.eq.s32.totalorder %s17, 0
      %p79 = por %p77, %p78
      %s80 = ssub.s32 %s18, %s30
      %s81 = ssub.s32 %s19, %s26
      %s82 = sor.u32 %s80, %s81
      %p83 = scmp.eq.s32.totalorder %s82, 0
      %s85 = sadd.s32 %s84, 1
      %s86 = scalar_select %p83, %s84, %s85
      %p89 = pneg %p83
      %p90 = scmp.eq.s32.totalorder %s11, 7
      %p91 = por %p89, %p90
      %p92 = scmp.ne.s32.totalorder %s84, %s87
      %p93 = scmp.eq.s32.totalorder %s11, 0
      %p94 = por %p92, %p93
      %p95 = scmp.ne.s32.totalorder %s84, %s87
      %p96 = scmp.eq.s32.totalorder %s16, 7
      %p97 = por %p95, %p96
      %p98 = scmp.ne.s32.totalorder %s87, %s88
      %p99 = scmp.eq.s32.totalorder %s16, 0
      %p100 = por %p98, %p99
      %p101 = scmp.ne.s32.totalorder %s87, %s88
      %p102 = scmp.eq.s32.totalorder %s17, 7
      %p103 = por %p101, %p102
      %p105 = scmp.ne.s32.totalorder %s88, %s104
      %p106 = scmp.eq.s32.totalorder %s17, 0
      %p107 = por %p105, %p106
      %s108 = ssub.s32 %s18, %s30
      %p109 = scmp.eq.s32.totalorder %s108, 0
      %s111 = sadd.s32 %s110, 1
      %s112 = scalar_select %p109, %s110, %s111
      %p115 = pneg %p109
      %p116 = scmp.eq.s32.totalorder %s11, 7
      %p117 = por %p115, %p116
      %p118 = scmp.ne.s32.totalorder %s110, %s113
      %p119 = scmp.eq.s32.totalorder %s11, 0
      %p120 = por %p118, %p119
      %p121 = scmp.ne.s32.totalorder %s110, %s113
      %p122 = scmp.eq.s32.totalorder %s16, 7
      %p123 = por %p121, %p122
      %p124 = scmp.ne.s32.totalorder %s113, %s114
      %p125 = scmp.eq.s32.totalorder %s16, 0
      %p126 = por %p124, %p125
      %p127 = scmp.ne.s32.totalorder %s113, %s114
      %p128 = scmp.eq.s32.totalorder %s17, 7
      %p129 = por %p127, %p128
      %p131 = scmp.ne.s32.totalorder %s114, %s130
      %p132 = scmp.eq.s32.totalorder %s17, 0
      %p133 = por %p131, %p132
      %s134 = ssub.s32 %s18, %s30
      %p135 = scmp.eq.s32.totalorder %s134, 0
      %s137 = sadd.s32 %s136, 1
      %s138 = scalar_select %p135, %s136, %s137
      %p141 = pneg %p135
      %p142 = scmp.eq.s32.totalorder %s11, 7
      %p143 = por %p141, %p142
      %p144 = scmp.ne.s32.totalorder %s136, %s139
      %p145 = scmp.eq.s32.totalorder %s11, 0
      %p146 = por %p144, %p145
      %p147 = scmp.ne.s32.totalorder %s136, %s139
      %p148 = scmp.eq.s32.totalorder %s16, 7
      %p149 = por %p147, %p148
      %p150 = scmp.ne.s32.totalorder %s139, %s140
      %p151 = scmp.eq.s32.totalorder %s16, 0
      %p152 = por %p150, %p151
      %p153 = scmp.ne.s32.totalorder %s139, %s140
      %p154 = scmp.eq.s32.totalorder %s17, 7
      %p155 = por %p153, %p154
      %p157 = scmp.ne.s32.totalorder %s140, %s156
      %p158 = scmp.eq.s32.totalorder %s17, 0
      %p159 = por %p157, %p158
      %p160 = scmp.le.s32.totalorder 1, %s11
      %p161 = scmp.lt.s32.totalorder %s11, 9
      %p162 = pnand %p160, %p161
      %p163 = pneg %p162
      // Predicated region
      $region9: #{basic_conv.2} parent=5 // pred_check
        _
      $region10: #{basic_conv.2} parent=5 // pred_check_branch
        %165 = sbr.rel (%p162) target = $region12
      $region11: #{basic_conv.2} parent=5 // pred_region
        %s166 = ssub.s32 %s11, 1
        // Predicated region
        $region13: #{basic_conv.2} parent=11 // pred_check
          %p167 = pneg %p72
        $region14: #{basic_conv.2} parent=11 // pred_check_branch
          %169 = sbr.rel (%p167) target = $region16
        $region15: #{basic_conv.2} parent=11 // pred_region
          _
        $region16: #{basic_conv.2} parent=11 // pred_fallthru
          _
      $region12: #{basic_conv.2} parent=5 // pred_fallthru
        _
      %p170 = scmp.lt.s32.totalorder %s11, 8
      // Predicated region
      $region17: #{basic_conv.2} parent=5 // pred_check
        %p171 = pneg %p170
      $region18: #{basic_conv.2} parent=5 // pred_check_branch
        %173 = sbr.rel (%p171) target = $region20
      $region19: #{basic_conv.2} parent=5 // pred_region
        // Predicated region
        $region21: #{basic_conv.2} parent=19 // pred_check
          %p174 = pneg %p45
        $region22: #{basic_conv.2} parent=19 // pred_check_branch
          %176 = sbr.rel (%p174) target = $region24
        $region23: #{basic_conv.2} parent=19 // pred_region
          %s177 = sand.u32 %s35, 1
          %s178 = sand.u32 %s35, 1
          %s179 = smul.addr %s178, 56
          %s180 = scalar_lea.vmem [#allocation4], %s179
          %s181 = smul.addr %s18, 56
          %s182 = sadd.s32 %s19, %s181
          %s183 = smul.addr %s182, 4
          %s184 = scalar_lea.vmem %s0, %s183
          // Predicated region
          $region25: #{basic_conv.2} parent=23 // pred_check
            _
          $region26: #{basic_conv.2} parent=23 // pred_check_branch
            %186 = sbr.rel (0) target = $region28
          $region27: #{basic_conv.2} parent=23 // pred_region
            // Predicated region
            $region29: #{basic_conv.2} parent=27 // pred_check
              _
            $region30: #{basic_conv.2} parent=27 // pred_check_branch
              %188 = sbr.rel target = $region32
            $region31: #{basic_conv.2} parent=27 // pred_region
              // Predicated region
              $region44: #{basic_conv.2} parent=31 // pred_check
                _
              $region45: #{basic_conv.2} parent=31 // pred_check_branch
                %230 = sbr.rel (0) target = $region47
              $region46: #{basic_conv.2} parent=31 // pred_region
                loop: start=0, step=1, limit=1
                $region48: #{basic_conv.2} parent=46 // loop_pre_header
                  _
                $region49: #{basic_conv.2} parent=46 // loop_header
                  %s232 = sphi 0, %s236
                  %p233 = scmp.ge.s32.totalorder %s232, 1
                  %s237 = sphi %s184, %s184
                  %s238 = sphi %s180, %s180
                $region50: #{basic_conv.2} parent=46 // loop_header_branch
                  %235 = sbr.rel (%p233) target = $region54
                $region51: #{basic_conv.2} parent=46 // loop_body
                  _
                $region52: #{basic_conv.2} parent=46 // loop_footer
                  %s236 = sadd.s32 1, %s232
                $region53: #{basic_conv.2} parent=46 // loop_footer_branch
                  %231 = sbr.rel target = $region49
                $region54: #{basic_conv.2} parent=46 // loop_exit
                  _
                %s240 = ssub.s32 16, 1
                loop: start=0, step=1, limit=1
                $region55: #{basic_conv.2} parent=46 // loop_pre_header
                  _
                $region56: #{basic_conv.2} parent=46 // loop_header
                  %s242 = sphi 0, %s246
                  %p243 = scmp.ge.s32.totalorder %s242, 1
                  %s247 = sphi %s184, %s184
                  %s248 = sphi %s180, %s180
                $region57: #{basic_conv.2} parent=46 // loop_header_branch
                  %245 = sbr.rel (%p243) target = $region61
                $region58: #{basic_conv.2} parent=46 // loop_body
                  %v249 = vld [vmem:[%s247] sm:%s240]
                  %250 = vst [vmem:[%s248] sm:%s240] %v249
                  %v251 = vld [vmem:[%s247 + $0x10] sm:%s240]
                  %252 = vst [vmem:[%s248 + $0x4] sm:%s240] %v251
                  %v253 = vld [vmem:[%s247 + $0x20] sm:%s240]
                  %254 = vst [vmem:[%s248 + $0x8] sm:%s240] %v253
                  %v255 = vld [vmem:[%s247 + $0x30] sm:%s240]
                  %256 = vst [vmem:[%s248 + $0xc] sm:%s240] %v255
                  %v257 = vld [vmem:[%s247 + $0x40] sm:%s240]
                  %258 = vst [vmem:[%s248 + $0x10] sm:%s240] %v257
                  %v259 = vld [vmem:[%s247 + $0x50] sm:%s240]
                  %260 = vst [vmem:[%s248 + $0x14] sm:%s240] %v259
                  %v261 = vld [vmem:[%s247 + $0x60] sm:%s240]
                  %262 = vst [vmem:[%s248 + $0x18] sm:%s240] %v261
                  %v263 = vld [vmem:[%s247 + $0x70] sm:%s240]
                  %264 = vst [vmem:[%s248 + $0x1c] sm:%s240] %v263
                  %v265 = vld [vmem:[%s247 + $0x80] sm:%s240]
                  %266 = vst [vmem:[%s248 + $0x20] sm:%s240] %v265
                  %v267 = vld [vmem:[%s247 + $0x90] sm:%s240]
                  %268 = vst [vmem:[%s248 + $0x24] sm:%s240] %v267
                  %v269 = vld [vmem:[%s247 + $0xa0] sm:%s240]
                  %270 = vst [vmem:[%s248 + $0x28] sm:%s240] %v269
                  %v271 = vld [vmem:[%s247 + $0xb0] sm:%s240]
                  %272 = vst [vmem:[%s248 + $0x2c] sm:%s240] %v271
                  %v273 = vld [vmem:[%s247 + $0xc0] sm:%s240]
                  %274 = vst [vmem:[%s248 + $0x30] sm:%s240] %v273
                  %v275 = vld [vmem:[%s247 + $0xd0] sm:%s240]
                  %276 = vst [vmem:[%s248 + $0x34] sm:%s240] %v275
                $region59: #{basic_conv.2} parent=46 // loop_footer
                  %s246 = sadd.s32 1, %s242
                $region60: #{basic_conv.2} parent=46 // loop_footer_branch
                  %241 = sbr.rel target = $region56
                $region61: #{basic_conv.2} parent=46 // loop_exit
                  _
              $region47: #{basic_conv.2} parent=31 // pred_fallthru
                _
            $region32: #{basic_conv.2} parent=27 // pred_fallthru
              _
            // Predicated region
            $region33: #{basic_conv.2} parent=27 // pred_check
              _
            $region34: #{basic_conv.2} parent=27 // pred_check_branch
              %190 = sbr.rel (0) target = $region36
            $region35: #{basic_conv.2} parent=27 // pred_region
              %s192 = ssub.s32 16, 1
              loop: start=0, step=1, limit=1
              $region37: #{basic_conv.2} parent=35 // loop_pre_header
                _
              $region38: #{basic_conv.2} parent=35 // loop_header
                %s194 = sphi 0, %s198
                %p195 = scmp.ge.s32.totalorder %s194, 1
                %s199 = sphi %s184, %s184
                %s200 = sphi %s180, %s180
              $region39: #{basic_conv.2} parent=35 // loop_header_branch
                %197 = sbr.rel (%p195) target = $region43
              $region40: #{basic_conv.2} parent=35 // loop_body
                %v201 = vld [vmem:[%s199] sm:%s192]
                %202 = vst [vmem:[%s200] sm:%s192] %v201
                %v203 = vld [vmem:[%s199 + $0x10] sm:%s192]
                %204 = vst [vmem:[%s200 + $0x4] sm:%s192] %v203
                %v205 = vld [vmem:[%s199 + $0x20] sm:%s192]
                %206 = vst [vmem:[%s200 + $0x8] sm:%s192] %v205
                %v207 = vld [vmem:[%s199 + $0x30] sm:%s192]
                %208 = vst [vmem:[%s200 + $0xc] sm:%s192] %v207
                %v209 = vld [vmem:[%s199 + $0x40] sm:%s192]
                %210 = vst [vmem:[%s200 + $0x10] sm:%s192] %v209
                %v211 = vld [vmem:[%s199 + $0x50] sm:%s192]
                %212 = vst [vmem:[%s200 + $0x14] sm:%s192] %v211
                %v213 = vld [vmem:[%s199 + $0x60] sm:%s192]
                %214 = vst [vmem:[%s200 + $0x18] sm:%s192] %v213
                %v215 = vld [vmem:[%s199 + $0x70] sm:%s192]
                %216 = vst [vmem:[%s200 + $0x1c] sm:%s192] %v215
                %v217 = vld [vmem:[%s199 + $0x80] sm:%s192]
                %218 = vst [vmem:[%s200 + $0x20] sm:%s192] %v217
                %v219 = vld [vmem:[%s199 + $0x90] sm:%s192]
                %220 = vst [vmem:[%s200 + $0x24] sm:%s192] %v219
                %v221 = vld [vmem:[%s199 + $0xa0] sm:%s192]
                %222 = vst [vmem:[%s200 + $0x28] sm:%s192] %v221
                %v223 = vld [vmem:[%s199 + $0xb0] sm:%s192]
                %224 = vst [vmem:[%s200 + $0x2c] sm:%s192] %v223
                %v225 = vld [vmem:[%s199 + $0xc0] sm:%s192]
                %226 = vst [vmem:[%s200 + $0x30] sm:%s192] %v225
                %v227 = vld [vmem:[%s199 + $0xd0] sm:%s192]
                %228 = vst [vmem:[%s200 + $0x34] sm:%s192] %v227
              $region41: #{basic_conv.2} parent=35 // loop_footer
                %s198 = sadd.s32 1, %s194
              $region42: #{basic_conv.2} parent=35 // loop_footer_branch
                %193 = sbr.rel target = $region38
              $region43: #{basic_conv.2} parent=35 // loop_exit
                _
            $region36: #{basic_conv.2} parent=27 // pred_fallthru
              _
          $region28: #{basic_conv.2} parent=23 // pred_fallthru
            _
          %277 = vnop
        $region24: #{basic_conv.2} parent=19 // pred_fallthru
          _
      $region20: #{basic_conv.2} parent=5 // pred_fallthru
        _
      %p278 = scmp.le.s32.totalorder 1, %s11
      %p279 = scmp.lt.s32.totalorder %s11, 9
      %p280 = pnand %p278, %p279
      %p281 = pneg %p280
      // Predicated region
      $region62: #{basic_conv.2} parent=5 // pred_check
        _
      $region63: #{basic_conv.2} parent=5 // pred_check_branch
        %283 = sbr.rel (%p280) target = $region65
      $region64: #{basic_conv.2} parent=5 // pred_region
        %s284 = ssub.s32 %s11, 1
        %s285 = sand.u32 %s38, 1
        %s286 = sand.u32 %s38, 1
        %s287 = smul.addr %s286, 56
        %s288 = scalar_lea.vmem [#allocation4], %s287
        // Predicated region
        $region66: #{basic_conv.2} parent=64 // pred_check
          %p289 = pneg %p51
        $region67: #{basic_conv.2} parent=64 // pred_check_branch
          %291 = sbr.rel (%p289) target = $region69
        $region68: #{basic_conv.2} parent=64 // pred_region
          _
        $region69: #{basic_conv.2} parent=64 // pred_fallthru
          _
        %s292 = sand.u32 %s38, 1
        %s293 = sand.u32 %s38, 1
        %s294 = smul.addr %s293, 56
        %s295 = scalar_lea.vmem [#allocation4], %s294
        %p296 = pneg %p51
        %p297 = pneg %p48
        %p298 = pneg %p72
        %p299 = pneg %p69
        %p300 = pneg %p100
        %p301 = pneg %p97
        %p302 = scmp.lt.s32.totalorder %s20, 1
        %s303 = scalar_select %p302, %s20, 1
        %p304 = scmp.lt.s32.totalorder %s21, 3
        %s305 = scalar_select %p304, %s21, 3
        %s306 = smul.addr %s303, 4
        %s307 = sadd.s32 %s305, %s306
        %s308 = smul.addr %s307, 8
        %s309 = scalar_lea.vmem %s2, %s308
        %p310 = pneg %p126
        %p311 = pneg %p123
        %p312 = scmp.lt.s32.totalorder %s20, 1
        %s313 = scalar_select %p312, %s20, 1
        %s314 = smul.addr %s313, 8
        %s315 = scalar_lea.vmem %s3, %s314
        %p316 = pneg %p152
        %p317 = pneg %p149
        %p318 = scmp.lt.s32.totalorder %s20, 1
        %s319 = scalar_select %p318, %s20, 1
        %s320 = smul.addr %s319, 8
        %s321 = scalar_lea.vmem %s4, %s320
        %p322 = scmp.lt.s32.totalorder %s20, 1
        %s323 = scalar_select %p322, %s20, 1
        %p324 = scmp.lt.s32.totalorder %s21, 3
        %s325 = scalar_select %p324, %s21, 3
        %s326 = smul.addr %s323, 4
        %s327 = sadd.s32 %s325, %s326
        %s328 = smul.addr %s327, 8
        %s329 = scalar_lea.vmem %s2, %s328
        %p330 = scmp.lt.s32.totalorder %s20, 1
        %s331 = scalar_select %p330, %s20, 1
        %s332 = smul.addr %s331, 8
        %s333 = scalar_lea.vmem %s3, %s332
        %p334 = scmp.lt.s32.totalorder %s20, 1
        %s335 = scalar_select %p334, %s20, 1
        %s336 = smul.addr %s335, 8
        %s337 = scalar_lea.vmem %s4, %s336
        %p339 = scmp.eq.s32.totalorder %s21, 0
        // Predicated region
        $region70: #{basic_conv.2} parent=64 // pred_check
          %p340 = pneg %p339
        $region71: #{basic_conv.2} parent=64 // pred_check_branch
          %342 = sbr.rel (%p340) target = $region73
        $region72: #{basic_conv.2} parent=64 // pred_region
          %vm343 = vcmask 7168
          %344 = vst.msk [vmem:[#allocation2] sm:$0xff] %vm343, 0.0
          %345 = vst.msk [vmem:[#allocation3] sm:$0xff] %vm343, 0.0
        $region73: #{basic_conv.2} parent=64 // pred_fallthru
          _
        %v346 = vld [vmem:[%s1] sm:$0xf]
        %v347 = vld [vmem:[%s288] sm:$0xf]
        %v348 = vld [vmem:[%s288 + $0x4] sm:$0xf]
        %v349 = vld [vmem:[%s288 + $0x8] sm:$0xf]
        %v350 = vld [vmem:[%s288 + $0xc] sm:$0xf]
        %v351 = vld [vmem:[%s288 + $0x10] sm:$0xf]
        %v352 = vld [vmem:[%s288 + $0x14] sm:$0xf]
        %v353 = vld [vmem:[%s288 + $0x18] sm:$0xf]
        %v354 = vld [vmem:[%s288 + $0x1c] sm:$0xf]
        %v355 = vld [vmem:[%s288 + $0x20] sm:$0xf]
        %v356 = vld [vmem:[%s288 + $0x24] sm:$0xf]
        %v357 = vld [vmem:[%s288 + $0x28] sm:$0xf]
        %v358 = vld [vmem:[%s288 + $0x2c] sm:$0xf]
        %v359 = vld [vmem:[%s288 + $0x30] sm:$0xf]
        %v360 = vld [vmem:[%s288 + $0x34] sm:$0xf]
        %v375 = vunpack.c.l.b16 %v347
        %v376 = vunpack.c.l.b16 %v348
        %v377 = vunpack.c.l.b16 %v349
        %v378 = vunpack.c.l.b16 %v350
        %v379 = vunpack.c.l.b16 %v351
        %v380 = vunpack.c.l.b16 %v352
        %v381 = vunpack.c.l.b16 %v353
        %v382 = vunpack.c.l.b16 %v354
        %v383 = vunpack.c.l.b16 %v355
        %v384 = vunpack.c.l.b16 %v356
        %v385 = vunpack.c.l.b16 %v357
        %v386 = vunpack.c.l.b16 %v358
        %v387 = vunpack.c.l.b16 %v359
        %v388 = vunpack.c.l.b16 %v360
        %v389 = vpack.c.b16 %v376, %v375
        %v390 = vpack.c.b16 %v378, %v377
        %v391 = vpack.c.b16 %v380, %v379
        %v392 = vpack.c.b16 %v382, %v381
        %v393 = vpack.c.b16 %v384, %v383
        %v394 = vpack.c.b16 %v386, %v385
        %v395 = vpack.c.b16 %v388, %v387
        %vm403 = vcmask 916480
        %v405 = vsel %vm403, %v346, 0
        %407 = vmatpush.bf16.msra.mxu0 0
        %408 = vmatpush.bf16.msra.mxu0 %v395
        %409 = vmatpush.bf16.msra.mxu0 %v394
        %410 = vmatpush.bf16.msra.mxu0 %v393
        %411 = vmatpush.bf16.msra.mxu0 %v392
        %412 = vmatpush.bf16.msra.mxu0 %v391
        %413 = vmatpush.bf16.msra.mxu0 %v390
        %414 = vmatpush.bf16.msra.mxu0 %v389
        %415 = vmatmul.bf16.gmra.mxu0 %v405
        %v416 = vpop.f32.mrf.mxu0
        %v417 = vadd.f32 0.0, %v416
        %v418 = vpop.f32.mrf.mxu0
        %419 = vdwg.mxu0
        %420 = vst [vmem:[%s329] sm:$0xff] %v417
        %v421 = vld [vmem:[#allocation2] sm:$0xff]
        %422 = vadd.xlane.f32.xlu0 %v417
        %v423 = vpop.xlane.xlu0 %422
        %v424 = vadd.f32 %v421, %v423
        %vm425 = vcmask 7168
        %426 = vst.msk [vmem:[#allocation2] sm:$0xff] %vm425, %v424
        %v427 = vld [vmem:[#allocation3] sm:$0xff]
        %v428 = vmul.f32 %v417, %v417
        %429 = vadd.xlane.f32.xlu0 %v428
        %v430 = vpop.xlane.xlu0 %429
        %v431 = vadd.f32 %v427, %v430
        %432 = vst.msk [vmem:[#allocation3] sm:$0xff] %vm425, %v431
        %p433 = scmp.eq.s32.totalorder %s21, 3
        // Predicated region
        $region74: #{basic_conv.2} parent=64 // pred_check
          %p434 = pneg %p433
        $region75: #{basic_conv.2} parent=64 // pred_check_branch
          %436 = sbr.rel (%p434) target = $region77
        $region76: #{basic_conv.2} parent=64 // pred_region
          %v437 = vld [vmem:[#allocation2] sm:$0xff]
          %v438 = vmul.f32 %v437, 0.001953125
          %v439 = vld [vmem:[#allocation3] sm:$0xff]
          %v440 = vmul.f32 %v439, 0.001953125
          %v441 = vmul.f32 %v438, %v438
          %v442 = vsub.f32 %v440, %v441
          %v443 = vmax.f32 %v442, 0.0
          %444 = vst.msk [vmem:[%s333] sm:$0xff] %vm425, %v438
          %v445 = vadd.f32 %v443, 1e-05
          %v446 = vrsqrt.pop %v445
          %v447 = vmul.f32 %v446, %v445
          %v448 = vmul.f32 %v447, %v446
          %v449 = vmul.f32 0.5, %v448
          %v450 = vsub.f32 1.5, %v449
          %v451 = vmul.f32 %v446, %v450
          %vm452 = vweird.f32 %v445
          %vm453 = vweird.f32 %v446
          %vm454 = vmor %vm452, %vm453
          %v455 = vsel %vm454, %v446, %v451
          %456 = vst.msk [vmem:[%s337] sm:$0xff] %vm425, %v455
        $region77: #{basic_conv.2} parent=64 // pred_fallthru
          _
        %p457 = scmp.lt.s32.totalorder %s20, 1
        %s458 = scalar_select %p457, %s20, 1
        %p459 = scmp.lt.s32.totalorder %s21, 3
        %s460 = scalar_select %p459, %s21, 3
        %s461 = smul.addr %s458, 4
        %s462 = sadd.s32 %s460, %s461
        %s463 = smul.addr %s462, 8
        %s464 = scalar_lea.vmem %s2, %s463
        %p465 = scmp.lt.s32.totalorder %s20, 1
        %s466 = scalar_select %p465, %s20, 1
        %s467 = smul.addr %s466, 8
        %s468 = scalar_lea.vmem %s3, %s467
        %p469 = scmp.lt.s32.totalorder %s20, 1
        %s470 = scalar_select %p469, %s20, 1
        %s471 = smul.addr %s470, 8
        %s472 = scalar_lea.vmem %s4, %s471
        // Predicated region
        $region78: #{basic_conv.2} parent=64 // pred_check
          %p473 = pneg %p97
        $region79: #{basic_conv.2} parent=64 // pred_check_branch
          %475 = sbr.rel (%p473) target = $region81
        $region80: #{basic_conv.2} parent=64 // pred_region
          _
        $region81: #{basic_conv.2} parent=64 // pred_fallthru
          _
        // Predicated region
        $region82: #{basic_conv.2} parent=64 // pred_check
          %p476 = pneg %p123
        $region83: #{basic_conv.2} parent=64 // pred_check_branch
          %478 = sbr.rel (%p476) target = $region85
        $region84: #{basic_conv.2} parent=64 // pred_region
          _
        $region85: #{basic_conv.2} parent=64 // pred_fallthru
          _
        // Predicated region
        $region86: #{basic_conv.2} parent=64 // pred_check
          %p479 = pneg %p149
        $region87: #{basic_conv.2} parent=64 // pred_check_branch
          %481 = sbr.rel (%p479) target = $region89
        $region88: #{basic_conv.2} parent=64 // pred_region
          _
        $region89: #{basic_conv.2} parent=64 // pred_fallthru
          _
      $region65: #{basic_conv.2} parent=5 // pred_fallthru
        _
      %p482 = scmp.le.s32.totalorder 2, %s11
      // Predicated region
      $region90: #{basic_conv.2} parent=5 // pred_check
        %p483 = pneg %p482
      $region91: #{basic_conv.2} parent=5 // pred_check_branch
        %485 = sbr.rel (%p483) target = $region93
      $region92: #{basic_conv.2} parent=5 // pred_region
        %s486 = ssub.s32 %s11, 2
        // Predicated region
        $region94: #{basic_conv.2} parent=92 // pred_check
          %p487 = pneg %p103
        $region95: #{basic_conv.2} parent=92 // pred_check_branch
          %489 = sbr.rel (%p487) target = $region97
        $region96: #{basic_conv.2} parent=92 // pred_region
          %p490 = scmp.lt.s32.totalorder %s22, 1
          %s491 = scalar_select %p490, %s22, 1
          %p492 = scmp.lt.s32.totalorder %s23, 3
          %s493 = scalar_select %p492, %s23, 3
          %s494 = smul.addr %s491, 4
          %s495 = sadd.s32 %s493, %s494
          %s496 = smul.addr %s495, 8
          %s497 = scalar_lea.vmem %s2, %s496
        $region97: #{basic_conv.2} parent=92 // pred_fallthru
          _
        // Predicated region
        $region98: #{basic_conv.2} parent=92 // pred_check
          %p498 = pneg %p129
        $region99: #{basic_conv.2} parent=92 // pred_check_branch
          %500 = sbr.rel (%p498) target = $region101
        $region100: #{basic_conv.2} parent=92 // pred_region
          %p501 = scmp.lt.s32.totalorder %s22, 1
          %s502 = scalar_select %p501, %s22, 1
          %s503 = smul.addr %s502, 8
          %s504 = scalar_lea.vmem %s3, %s503
        $region101: #{basic_conv.2} parent=92 // pred_fallthru
          _
        // Predicated region
        $region102: #{basic_conv.2} parent=92 // pred_check
          %p505 = pneg %p155
        $region103: #{basic_conv.2} parent=92 // pred_check_branch
          %507 = sbr.rel (%p505) target = $region105
        $region104: #{basic_conv.2} parent=92 // pred_region
          %p508 = scmp.lt.s32.totalorder %s22, 1
          %s509 = scalar_select %p508, %s22, 1
          %s510 = smul.addr %s509, 8
          %s511 = scalar_lea.vmem %s4, %s510
        $region105: #{basic_conv.2} parent=92 // pred_fallthru
          _
      $region93: #{basic_conv.2} parent=5 // pred_fallthru
        _
    $region6: #{basic_conv.2} parent=1 // loop_footer
      %s15 = sadd.s32 1, %s11
    $region7: #{basic_conv.2} parent=1 // loop_footer_branch
      %10 = sbr.rel target = $region3
    $region8: #{basic_conv.2} parent=1 // loop_exit
      _

</llo_original>
